<compile_context>
chip_gen: v6e
topology: v6e:2x2x1
jax: 0.10.0
libtpu: 0.0.40
codegen_flags: <defaults>
</compile_context>

<pallas_src>
import jax
import jax.numpy as jnp
from jax import lax
from jax.experimental import pallas as pl
from jax.experimental.pallas import tpu as pltpu


def _make_kernel(with_box: bool):
    def kernel(*refs):
        if with_box:
            emb_ref, box_ref, w1e_ref, w1b_ref, b1_ref, w2_ref, b2_ref, o_ref = refs
        else:
            emb_ref, w1e_ref, b1_ref, w2_ref, b2_ref, o_ref = refs

        # fc1: bf16 x bf16 on the MXU, f32 accumulation.
        h = jnp.dot(emb_ref[...].astype(jnp.bfloat16), w1e_ref[...],
                    preferred_element_type=jnp.float32)
        if with_box:
            # Tiny K=4 contribution from box features.
            h = h + jnp.dot(box_ref[...], w1b_ref[...],
                            preferred_element_type=jnp.float32)
        h = jnp.maximum(h + b1_ref[...], 0.0)

        # fc2 (N=1): contract H of w2 (1,H) with H of h (tm,H) -> (1, tm).
        # Result comes out lane-dense, so the store is an unmasked row write.
        y = lax.dot_general(w2_ref[...], h, (((1,), (1,)), ((), ())),
                            preferred_element_type=jnp.float32)
        o_ref[0] = jnp.maximum(y + b2_ref[0], 0.0)

    return kernel


def _largest_tile_dividing(b, cap):
    """Largest multiple of 8 that divides b (b % 8 == 0) and is <= cap; >= 8."""
    m = b // 8
    best = 1
    d = 1
    while d * d <= m:
        if m % d == 0:
            for q in (d, m // d):
                if 8 * q <= cap:
                    best = max(best, q)
        d += 1
    return 8 * best


def _choose_tiling(B, tm_max):
    """Pick (b_pad, tm) with tm % 8 == 0 and tm | b_pad, using minimal padding.

    Aligned batches are not padded at all (no extra HBM copy).  Batches >= 512 rows
    get a tile cap so the grid has >= 2 steps (dual-TC on v7x + DMA/compute overlap).
    """
    b8 = -(-B // 8) * 8
    cap = max(8, min(tm_max, b8))
    if b8 >= 512:
        cap = max(8, min(cap, max(256, b8 // 2)))
    tm = _largest_tile_dividing(b8, cap)
    if tm == b8 or tm >= min(cap, 128):
        return b8, tm
    # b8 only has tiny multiple-of-8 divisors (e.g. 8 * prime): pad up to a multiple
    # of a healthy tile rather than eating hundreds of 8-row grid steps.
    t = max(8, (min(cap, 256) // 8) * 8)
    b_pad = -(-b8 // t) * t
    return b_pad, _largest_tile_dividing(b_pad, cap)


def price_predictor_forward(embeddings, params, box_features=None, *, tm_max=1024):
    """Replicates PricePredictor.forward semantics with a fused Pallas kernel.

    embeddings may be float32 or bfloat16 (bf16 halves the dominant HBM stream).
    """
    w1_emb, w1_box, b1, w2_row, b2 = params
    B, E = embeddings.shape
    H = w1_emb.shape[1]
    with_box = box_features is not None

    b_pad, tm = _choose_tiling(B, tm_max)
    grid = b_pad // tm

    if with_box and box_features.dtype != jnp.float32:
        box_features = box_features.astype(jnp.float32)
    if b_pad != B:
        pad = b_pad - B
        embeddings = jnp.pad(embeddings, ((0, pad), (0, 0)))
        if with_box:
            box_features = jnp.pad(box_features, ((0, pad), (0, 0)))

    emb_spec = pl.BlockSpec((tm, E), lambda i: (i, 0))          # streamed batch tile
    w1e_spec = pl.BlockSpec((E, H), lambda i: (0, 0))           # resident bf16 weight
    b1_spec = pl.BlockSpec((1, H), lambda i: (0, 0))            # resident bias row
    w2_spec = pl.BlockSpec((1, H), lambda i: (0, 0))            # resident fc2 row
    b2_spec = pl.BlockSpec(memory_space=pltpu.MemorySpace.SMEM)  # scalar bias
    out_spec = pl.BlockSpec((1, 1, tm), lambda i: (i, 0, 0))    # lane-dense row tile

    if with_box:
        in_specs = [emb_spec,
                    pl.BlockSpec((tm, 4), lambda i: (i, 0)),
                    w1e_spec,
                    pl.BlockSpec((4, H), lambda i: (0, 0)),
                    b1_spec, w2_spec, b2_spec]
        args = (embeddings, box_features, w1_emb, w1_box, b1, w2_row, b2)
    else:
        in_specs = [emb_spec, w1e_spec, b1_spec, w2_spec, b2_spec]
        args = (embeddings, w1_emb, b1, w2_row, b2)

    # Rough VMEM working-set estimate; only raise the scoped limit when a caller
    # picks tiles big enough to exceed the smallest (v5e, 16 MiB) default.
    itemsize = jnp.dtype(embeddings.dtype).itemsize
    est = (2 * tm * (E * itemsize + (16 if with_box else 0))   # double-buffered inputs
           + 2 * tm * 4                                        # double-buffered output
           + 2 * (E * H * 2 + 4 * H * 4 + 2 * H * 4)           # resident weights
           + tm * H * 4                                        # h intermediate
           + (2 << 20))                                        # headroom
    cp_kwargs = {"dimension_semantics": ("parallel",)}
    if est > (16 << 20):
        cp_kwargs["vmem_limit_bytes"] = int(min(max(est, 32 << 20), 56 << 20))

    out = pl.pallas_call(
        _make_kernel(with_box),
        out_shape=jax.ShapeDtypeStruct((grid, 1, tm), jnp.float32),
        grid=(grid,),
        in_specs=in_specs,
        out_specs=out_spec,
        compiler_params=pltpu.CompilerParams(**cp_kwargs),
    )(*args)

    # (grid, 1, tm) rows -> (b_pad, 1) column; padded rows (relu of biases) sliced off.
    return out.reshape(b_pad, 1)[:B]


def init_params(key, embedding_dim=768, hidden_dim=128):
    """nn.Linear-style init U(-1/sqrt(fan_in), +1/sqrt(fan_in)), reshaped for the kernel."""
    k1, k2, k3, k4 = jax.random.split(key, 4)
    in1 = embedding_dim + 4
    bound1 = 1.0 / float(jnp.sqrt(in1))
    bound2 = 1.0 / float(jnp.sqrt(hidden_dim))
    w1 = jax.random.uniform(k1, (in1, hidden_dim), jnp.float32, -bound1, bound1)
    b1 = jax.random.uniform(k2, (1, hidden_dim), jnp.float32, -bound1, bound1)
    w2 = jax.random.uniform(k3, (hidden_dim, 1), jnp.float32, -bound2, bound2)
    b2 = jax.random.uniform(k4, (1,), jnp.float32, -bound2, bound2)
    # Split W1 along the concat dim; the big slab is stored bf16 (halves HBM traffic).
    w1_emb = w1[:embedding_dim].astype(jnp.bfloat16)   # (E, H) bf16
    w1_box = w1[embedding_dim:]                        # (4, H) f32
    w2_row = w2.T                                      # (1, H) f32
    return (w1_emb, w1_box, b1, w2_row, b2)


def _reference(embeddings, params, box_features=None):
    """Pure-JAX reference using the same bf16 rounding as the kernel."""
    w1_emb, w1_box, b1, w2_row, b2 = params
    h = jnp.dot(embeddings.astype(jnp.bfloat16), w1_emb,
                preferred_element_type=jnp.float32)
    if box_features is not None:
        h = h + jnp.dot(box_features.astype(jnp.float32), w1_box,
                        precision=lax.Precision.HIGHEST)
    h = jnp.maximum(h + b1, 0.0)
    y = jnp.sum(h * w2_row, axis=-1, keepdims=True) + b2
    return jnp.maximum(y, 0.0)


if __name__ == "__main__":
    key = jax.random.PRNGKey(0)
    kp, ke, kb = jax.random.split(key, 3)

    embedding_dim, hidden_dim, batch = 768, 128, 8
    params = init_params(kp, embedding_dim, hidden_dim)

    embeddings = jax.random.normal(ke, (batch, embedding_dim), jnp.float32)
    box_features = jax.random.normal(kb, (batch, 4), jnp.float32)

    # 1) f32 embeddings + box features
    out = jax.block_until_ready(price_predictor_forward(embeddings, params, box_features))
    ref = _reference(embeddings, params, box_features)
    assert out.shape == (batch, 1)
    assert jnp.allclose(out, ref, atol=1e-3, rtol=1e-3), "box path mismatch"

    # 2) box_features=None path (dedicated no-box kernel; matches zeros-concat semantics)
    out_none = jax.block_until_ready(price_predictor_forward(embeddings, params, None))
    ref_none = _reference(embeddings, params, None)
    assert jnp.allclose(out_none, ref_none, atol=1e-3, rtol=1e-3), "no-box path mismatch"

    # 3) bf16 embeddings (preferred caller contract) with an unaligned batch (pads to 8)
    emb_bf16 = embeddings[:5].astype(jnp.bfloat16)
    out_bf16 = jax.block_until_ready(
        price_predictor_forward(emb_bf16, params, box_features[:5]))
    ref_bf16 = _reference(emb_bf16, params, box_features[:5])
    assert out_bf16.shape == (5, 1)
    assert jnp.allclose(out_bf16, ref_bf16, atol=1e-3, rtol=1e-3), "bf16 path mismatch"

    print("KERNEL_OK")
</pallas_src>

<mosaic_0001>
module attributes {stable_mosaic.version = 11 : i64} {
  func.func @kernel(%arg0: i32, %arg1: memref<8x768xf32, #tpu.memory_space<vmem>>, %arg2: memref<8x4xf32, #tpu.memory_space<vmem>>, %arg3: memref<768x128xbf16, #tpu.memory_space<vmem>>, %arg4: memref<4x128xf32, #tpu.memory_space<vmem>>, %arg5: memref<1x128xf32, #tpu.memory_space<vmem>>, %arg6: memref<1x128xf32, #tpu.memory_space<vmem>>, %arg7: memref<1xf32, #tpu.memory_space<smem>>, %arg8: memref<1x1x8xf32, #tpu.memory_space<vmem>>) attributes {dimension_semantics = [#tpu.dimension_semantics<parallel>], iteration_bounds = array<i64: 1>, scalar_prefetch = 0 : i64, scratch_operands = 0 : i64, tpu.core_type = #tpu.core_type<tc>, window_params = [{transform_indices = @transform_0, window_bounds = array<i64: 8, 768>}, {transform_indices = @transform_1, window_bounds = array<i64: 8, 4>}, {pipeline_mode = #tpu.pipeline_mode<synchronous>, transform_indices = @transform_2, window_bounds = array<i64: 768, 128>}, {pipeline_mode = #tpu.pipeline_mode<synchronous>, transform_indices = @transform_3, window_bounds = array<i64: 4, 128>}, {pipeline_mode = #tpu.pipeline_mode<synchronous>, transform_indices = @transform_4, window_bounds = array<i64: 1, 128>}, {pipeline_mode = #tpu.pipeline_mode<synchronous>, transform_indices = @transform_5, window_bounds = array<i64: 1, 128>}, {transform_indices = @transform_6, window_bounds = array<i64: 1>}, {transform_indices = @transform_7, window_bounds = array<i64: 1, 1, 8>}]} {
    %c0 = arith.constant 0 : index
    %c0_0 = arith.constant 0 : index
    %0 = vector.load %arg1[%c0, %c0_0] : memref<8x768xf32, #tpu.memory_space<vmem>>, vector<8x768xf32>
    %1 = arith.truncf %0 : vector<8x768xf32> to vector<8x768xbf16>
    %c0_1 = arith.constant 0 : index
    %c0_2 = arith.constant 0 : index
    %2 = vector.load %arg3[%c0_1, %c0_2] : memref<768x128xbf16, #tpu.memory_space<vmem>>, vector<768x128xbf16>
    %cst = arith.constant dense<0.000000e+00> : vector<8x128xf32>
    %3 = tpu.matmul %1, %2, %cst {dimension_numbers = #tpu.dot_dimension_numbers<[1], [0], [0], [1], [0, 0, 1, 1], [], []>} : vector<8x768xbf16>, vector<768x128xbf16>, vector<8x128xf32> -> vector<8x128xf32>
    %c0_3 = arith.constant 0 : index
    %c0_4 = arith.constant 0 : index
    %4 = vector.load %arg2[%c0_3, %c0_4] : memref<8x4xf32, #tpu.memory_space<vmem>>, vector<8x4xf32>
    %c0_5 = arith.constant 0 : index
    %c0_6 = arith.constant 0 : index
    %5 = vector.load %arg4[%c0_5, %c0_6] : memref<4x128xf32, #tpu.memory_space<vmem>>, vector<4x128xf32>
    %cst_7 = arith.constant dense<0.000000e+00> : vector<8x128xf32>
    %6 = tpu.matmul %4, %5, %cst_7 {dimension_numbers = #tpu.dot_dimension_numbers<[1], [0], [0], [1], [0, 0, 1, 1], [], []>} : vector<8x4xf32>, vector<4x128xf32>, vector<8x128xf32> -> vector<8x128xf32>
    %7 = arith.addf %3, %6 : vector<8x128xf32>
    %c0_8 = arith.constant 0 : index
    %c0_9 = arith.constant 0 : index
    %8 = vector.load %arg5[%c0_8, %c0_9] : memref<1x128xf32, #tpu.memory_space<vmem>>, vector<1x128xf32>
    %9 = vector.broadcast %8 : vector<1x128xf32> to vector<8x128xf32>
    %10 = arith.addf %7, %9 : vector<8x128xf32>
    %cst_10 = arith.constant 0.000000e+00 : f32
    %11 = vector.broadcast %cst_10 : f32 to vector<8x128xf32>
    %12 = arith.maximumf %10, %11 : vector<8x128xf32>
    %c0_11 = arith.constant 0 : index
    %c0_12 = arith.constant 0 : index
    %13 = vector.load %arg6[%c0_11, %c0_12] : memref<1x128xf32, #tpu.memory_space<vmem>>, vector<1x128xf32>
    %cst_13 = arith.constant dense<0.000000e+00> : vector<1x8xf32>
    %14 = tpu.matmul %13, %12, %cst_13 {dimension_numbers = #tpu.dot_dimension_numbers<[1], [1], [0], [0], [0, 0, 1, 0], [], []>} : vector<1x128xf32>, vector<8x128xf32>, vector<1x8xf32> -> vector<1x8xf32>
    %c0_14 = arith.constant 0 : index
    %15 = memref.load %arg7[%c0_14] : memref<1xf32, #tpu.memory_space<smem>>
    %16 = vector.broadcast %15 : f32 to vector<1x8xf32>
    %17 = arith.addf %14, %16 : vector<1x8xf32>
    %cst_15 = arith.constant 0.000000e+00 : f32
    %18 = vector.broadcast %cst_15 : f32 to vector<1x8xf32>
    %19 = arith.maximumf %17, %18 : vector<1x8xf32>
    %c0_16 = arith.constant 0 : index
    %c0_17 = arith.constant 0 : index
    %c0_18 = arith.constant 0 : index
    %20 = vector.load %arg8[%c0_16, %c0_17, %c0_18] : memref<1x1x8xf32, #tpu.memory_space<vmem>>, vector<1x1x8xf32>
    %21 = vector.shape_cast %20 : vector<1x1x8xf32> to vector<1x8xf32>
    %22 = vector.shape_cast %19 : vector<1x8xf32> to vector<1x1x8xf32>
    tpu.vector_store %arg8[%c0_16, %c0_17, %c0_18], %22 {strides = array<i32>} : memref<1x1x8xf32, #tpu.memory_space<vmem>>, vector<1x1x8xf32>,
    return
  }
  func.func @transform_0(%arg0: i32) -> (i32, i32) {
    %c0_i32 = arith.constant 0 : i32
    %c0_i32_0 = arith.constant 0 : i32
    return %arg0, %c0_i32 : i32, i32
  }
  func.func @transform_1(%arg0: i32) -> (i32, i32) {
    %c0_i32 = arith.constant 0 : i32
    %c0_i32_0 = arith.constant 0 : i32
    return %arg0, %c0_i32 : i32, i32
  }
  func.func @transform_2(%arg0: i32) -> (i32, i32) {
    %c0_i32 = arith.constant 0 : i32
    %c0_i32_0 = arith.constant 0 : i32
    %c0_i32_1 = arith.constant 0 : i32
    return %c0_i32, %c0_i32_0 : i32, i32
  }
  func.func @transform_3(%arg0: i32) -> (i32, i32) {
    %c0_i32 = arith.constant 0 : i32
    %c0_i32_0 = arith.constant 0 : i32
    %c0_i32_1 = arith.constant 0 : i32
    return %c0_i32, %c0_i32_0 : i32, i32
  }
  func.func @transform_4(%arg0: i32) -> (i32, i32) {
    %c0_i32 = arith.constant 0 : i32
    %c0_i32_0 = arith.constant 0 : i32
    %c0_i32_1 = arith.constant 0 : i32
    return %c0_i32, %c0_i32_0 : i32, i32
  }
  func.func @transform_5(%arg0: i32) -> (i32, i32) {
    %c0_i32 = arith.constant 0 : i32
    %c0_i32_0 = arith.constant 0 : i32
    %c0_i32_1 = arith.constant 0 : i32
    return %c0_i32, %c0_i32_0 : i32, i32
  }
  func.func @transform_6(%arg0: i32) -> i32 {
    %c0_i32 = arith.constant 0 : i32
    %c0_i32_0 = arith.constant 0 : i32
    return %c0_i32 : i32
  }
  func.func @transform_7(%arg0: i32) -> (i32, i32, i32) {
    %c0_i32 = arith.constant 0 : i32
    %c0_i32_0 = arith.constant 0 : i32
    %c0_i32_1 = arith.constant 0 : i32
    return %arg0, %c0_i32, %c0_i32_0 : i32, i32, i32
  }
}

</mosaic_0001>

<llo_original>
// kernel: tpu_custom_call.1
$region0: #{tpu_custom_call.1}
  #allocation0 [shape = 'u32[]', space=smem, size = 0x4, offset = 0x4, fixed_abs, tag = 'smem constant byte address 0x4 - core index']
  #allocation1 [shape = 'u32[144,128]{1,0:T(1,128)}', space=vmem, size = 0x12000, scoped, tag = 'internal scratch']
  #allocation2 [shape = 'f32[1]{0:T(128)S(6)}', space=smem, size = 0x200, scoped, tag = 'scoped memory for tpu_custom_call.1']
  %s0 = inlined_call_operand.hbm [shape: f32[8,768], index: 0, kind: input, shape index: {}]
  %s1 = inlined_call_operand.vmem [shape: f32[8,4], index: 1, kind: input, shape index: {}]
  %s2 = inlined_call_operand.hbm [shape: bf16[768,128], index: 2, kind: input, shape index: {}]
  %s3 = inlined_call_operand.vmem [shape: f32[4,128], index: 3, kind: input, shape index: {}]
  %s4 = inlined_call_operand.vmem [shape: f32[1,128], index: 4, kind: input, shape index: {}]
  %s5 = inlined_call_operand.vmem [shape: f32[1,128], index: 5, kind: input, shape index: {}]
  %s6 = inlined_call_operand.<no memory space> [shape: f32[1], index: 6, kind: input, shape index: {}]
  %s7 = inlined_call_operand.hbm [shape: f32[1,1,8], index: 7, kind: output, shape index: {}]
  %s8 = sld [smem:[#allocation0]]
  $region46: #{tpu_custom_call.1} parent=0
    _
  %s10 = ssub.s32 1, %s8
  %s11 = scalar_select 0, %s10, %s8
  %12 = sst [smem:[#allocation2]] %s6
  $region1: #{tpu_custom_call.1} parent=0
    #allocation3 [shape = 'u8[24576]{0}', space=vmem, size = 0x6000, scoped, tag = 'input window, operand 0, single buffered']
    #allocation4 [shape = 's32[1]{0}', space=sflag, size = 0x4, scoped, tag = 'scoped memory for tpu_custom_call.1']
    #allocation5 [shape = 's32[1]{0}', space=sflag, size = 0x4, scoped, tag = 'scoped memory for tpu_custom_call.1']
    #allocation6 [shape = 'u8[196608]{0}', space=vmem, size = 0x30000, scoped, tag = 'input window, operand 2, single buffered']
    #allocation7 [shape = 's32[1]{0}', space=sflag, size = 0x4, scoped, tag = 'scoped memory for tpu_custom_call.1']
    #allocation8 [shape = 'u8[512]{0}', space=vmem, size = 0x400, scoped, tag = 'output window, operand 0, single buffered']
    %13 = vsyncpa [#allocation4], 0
    %14 = vsyncpa [#allocation7], 0
    %15 = vsyncpa [#allocation5], 0
    // Predicated region
    $region2: #{tpu_custom_call.1} parent=1 // pred_check
      _
    $region3: #{tpu_custom_call.1} parent=1 // pred_check_branch
      %17 = sbr.rel (0) target = $region5
    $region4: #{tpu_custom_call.1} parent=1 // pred_region
      %s19 = ssub.s32 768, 768
      %20 = vsyncadd [#allocation4], %s19
      %s22 = sshll.u32 [#allocation3], 4
      %s23 = int_to_ptr.vmem [resolvable:$true] %s22
      %25 = dma.hbm_to_vmem [thread:$0]  %s0, 768, %s23, [#allocation4]
    $region5: #{tpu_custom_call.1} parent=1 // pred_fallthru
      _
    // Predicated region
    $region6: #{tpu_custom_call.1} parent=1 // pred_check
      _
    $region7: #{tpu_custom_call.1} parent=1 // pred_check_branch
      %27 = sbr.rel (0) target = $region9
    $region8: #{tpu_custom_call.1} parent=1 // pred_region
      _
    $region9: #{tpu_custom_call.1} parent=1 // pred_fallthru
      _
    // Predicated region
    $region10: #{tpu_custom_call.1} parent=1 // pred_check
      _
    $region11: #{tpu_custom_call.1} parent=1 // pred_check_branch
      %29 = sbr.rel (0) target = $region13
    $region12: #{tpu_custom_call.1} parent=1 // pred_region
      %s31 = ssub.s32 6144, 6144
      %32 = vsyncadd [#allocation7], %s31
      %s33 = sshll.u32 [#allocation6], 4
      %s34 = int_to_ptr.vmem [resolvable:$true] %s33
      %39 = dma.hbm_to_vmem [thread:$0]  %s2, 6144, %s34, [#allocation7], 64, 64, 4
    $region13: #{tpu_custom_call.1} parent=1 // pred_fallthru
      _
    // Predicated region
    $region14: #{tpu_custom_call.1} parent=1 // pred_check
      _
    $region15: #{tpu_custom_call.1} parent=1 // pred_check_branch
      %41 = sbr.rel (0) target = $region17
    $region16: #{tpu_custom_call.1} parent=1 // pred_region
      _
    $region17: #{tpu_custom_call.1} parent=1 // pred_fallthru
      _
    // Predicated region
    $region18: #{tpu_custom_call.1} parent=1 // pred_check
      _
    $region19: #{tpu_custom_call.1} parent=1 // pred_check_branch
      %43 = sbr.rel (0) target = $region21
    $region20: #{tpu_custom_call.1} parent=1 // pred_region
      _
    $region21: #{tpu_custom_call.1} parent=1 // pred_fallthru
      _
    // Predicated region
    $region22: #{tpu_custom_call.1} parent=1 // pred_check
      _
    $region23: #{tpu_custom_call.1} parent=1 // pred_check_branch
      %45 = sbr.rel (0) target = $region25
    $region24: #{tpu_custom_call.1} parent=1 // pred_region
      _
    $region25: #{tpu_custom_call.1} parent=1 // pred_fallthru
      _
    // Predicated region
    $region26: #{tpu_custom_call.1} parent=1 // pred_check
      _
    $region27: #{tpu_custom_call.1} parent=1 // pred_check_branch
      %47 = sbr.rel (0) target = $region29
    $region28: #{tpu_custom_call.1} parent=1 // pred_region
      _
    $region29: #{tpu_custom_call.1} parent=1 // pred_fallthru
      _
    // Predicated region
    $region30: #{tpu_custom_call.1} parent=1 // pred_check
      _
    $region31: #{tpu_custom_call.1} parent=1 // pred_check_branch
      %49 = sbr.rel (0) target = $region33
    $region32: #{tpu_custom_call.1} parent=1 // pred_region
      %50 = dma.done [#allocation4], 768
    $region33: #{tpu_custom_call.1} parent=1 // pred_fallthru
      _
    // Predicated region
    $region34: #{tpu_custom_call.1} parent=1 // pred_check
      _
    $region35: #{tpu_custom_call.1} parent=1 // pred_check_branch
      %52 = sbr.rel (0) target = $region37
    $region36: #{tpu_custom_call.1} parent=1 // pred_region
      %53 = dma.done [#allocation7], 6144
    $region37: #{tpu_custom_call.1} parent=1 // pred_fallthru
      _
    %v55 = vld [vmem:[#allocation3] sm:$0xff]
    %v56 = vld [vmem:[#allocation3 + $0x8] sm:$0xff]
    %v57 = vld [vmem:[#allocation3 + $0x10] sm:$0xff]
    %v58 = vld [vmem:[#allocation3 + $0x18] sm:$0xff]
    %v59 = vld [vmem:[#allocation3 + $0x20] sm:$0xff]
    %v60 = vld [vmem:[#allocation3 + $0x28] sm:$0xff]
    %v61 = vpack.c.bf16 %v55, %v55
    %v62 = vpack.c.bf16 %v56, %v56
    %v63 = vpack.c.bf16 %v57, %v57
    %v64 = vpack.c.bf16 %v58, %v58
    %v65 = vpack.c.bf16 %v59, %v59
    %v66 = vpack.c.bf16 %v60, %v60
    %v67 = vld [vmem:[#allocation6] sm:$0xf]
    %v68 = vld [vmem:[#allocation6 + $0x4] sm:$0xf]
    %v69 = vld [vmem:[#allocation6 + $0x8] sm:$0xf]
    %v70 = vld [vmem:[#allocation6 + $0xc] sm:$0xf]
    %v71 = vld [vmem:[#allocation6 + $0x10] sm:$0xf]
    %v72 = vld [vmem:[#allocation6 + $0x14] sm:$0xf]
    %v73 = vld [vmem:[#allocation6 + $0x18] sm:$0xf]
    %v74 = vld [vmem:[#allocation6 + $0x1c] sm:$0xf]
    %v75 = vld [vmem:[#allocation6 + $0x20] sm:$0xf]
    %v76 = vld [vmem:[#allocation6 + $0x24] sm:$0xf]
    %v77 = vld [vmem:[#allocation6 + $0x28] sm:$0xf]
    %v78 = vld [vmem:[#allocation6 + $0x2c] sm:$0xf]
    %v79 = vld [vmem:[#allocation6 + $0x30] sm:$0xf]
    %v80 = vld [vmem:[#allocation6 + $0x34] sm:$0xf]
    %v81 = vld [vmem:[#allocation6 + $0x38] sm:$0xf]
    %v82 = vld [vmem:[#allocation6 + $0x3c] sm:$0xf]
    %v83 = vld [vmem:[#allocation6 + $0x40] sm:$0xf]
    %v84 = vld [vmem:[#allocation6 + $0x44] sm:$0xf]
    %v85 = vld [vmem:[#allocation6 + $0x48] sm:$0xf]
    %v86 = vld [vmem:[#allocation6 + $0x4c] sm:$0xf]
    %v87 = vld [vmem:[#allocation6 + $0x50] sm:$0xf]
    %v88 = vld [vmem:[#allocation6 + $0x54] sm:$0xf]
    %v89 = vld [vmem:[#allocation6 + $0x58] sm:$0xf]
    %v90 = vld [vmem:[#allocation6 + $0x5c] sm:$0xf]
    %v91 = vld [vmem:[#allocation6 + $0x60] sm:$0xf]
    %v92 = vld [vmem:[#allocation6 + $0x64] sm:$0xf]
    %v93 = vld [vmem:[#allocation6 + $0x68] sm:$0xf]
    %v94 = vld [vmem:[#allocation6 + $0x6c] sm:$0xf]
    %v95 = vld [vmem:[#allocation6 + $0x70] sm:$0xf]
    %v96 = vld [vmem:[#allocation6 + $0x74] sm:$0xf]
    %v97 = vld [vmem:[#allocation6 + $0x78] sm:$0xf]
    %v98 = vld [vmem:[#allocation6 + $0x7c] sm:$0xf]
    %v99 = vld [vmem:[#allocation6 + $0x80] sm:$0xf]
    %v100 = vld [vmem:[#allocation6 + $0x84] sm:$0xf]
    %v101 = vld [vmem:[#allocation6 + $0x88] sm:$0xf]
    %v102 = vld [vmem:[#allocation6 + $0x8c] sm:$0xf]
    %v103 = vld [vmem:[#allocation6 + $0x90] sm:$0xf]
    %v104 = vld [vmem:[#allocation6 + $0x94] sm:$0xf]
    %v105 = vld [vmem:[#allocation6 + $0x98] sm:$0xf]
    %v106 = vld [vmem:[#allocation6 + $0x9c] sm:$0xf]
    %v107 = vld [vmem:[#allocation6 + $0xa0] sm:$0xf]
    %v108 = vld [vmem:[#allocation6 + $0xa4] sm:$0xf]
    %v109 = vld [vmem:[#allocation6 + $0xa8] sm:$0xf]
    %v110 = vld [vmem:[#allocation6 + $0xac] sm:$0xf]
    %v111 = vld [vmem:[#allocation6 + $0xb0] sm:$0xf]
    %v112 = vld [vmem:[#allocation6 + $0xb4] sm:$0xf]
    %v113 = vld [vmem:[#allocation6 + $0xb8] sm:$0xf]
    %v114 = vld [vmem:[#allocation6 + $0xbc] sm:$0xf]
    %v115 = vld [vmem:[#allocation6 + $0xc0] sm:$0xf]
    %v116 = vld [vmem:[#allocation6 + $0xc4] sm:$0xf]
    %v117 = vld [vmem:[#allocation6 + $0xc8] sm:$0xf]
    %v118 = vld [vmem:[#allocation6 + $0xcc] sm:$0xf]
    %v119 = vld [vmem:[#allocation6 + $0xd0] sm:$0xf]
    %v120 = vld [vmem:[#allocation6 + $0xd4] sm:$0xf]
    %v121 = vld [vmem:[#allocation6 + $0xd8] sm:$0xf]
    %v122 = vld [vmem:[#allocation6 + $0xdc] sm:$0xf]
    %v123 = vld [vmem:[#allocation6 + $0xe0] sm:$0xf]
    %v124 = vld [vmem:[#allocation6 + $0xe4] sm:$0xf]
    %v125 = vld [vmem:[#allocation6 + $0xe8] sm:$0xf]
    %v126 = vld [vmem:[#allocation6 + $0xec] sm:$0xf]
    %v127 = vld [vmem:[#allocation6 + $0xf0] sm:$0xf]
    %v128 = vld [vmem:[#allocation6 + $0xf4] sm:$0xf]
    %v129 = vld [vmem:[#allocation6 + $0xf8] sm:$0xf]
    %v130 = vld [vmem:[#allocation6 + $0xfc] sm:$0xf]
    %v131 = vld [vmem:[#allocation6 + $0x100] sm:$0xf]
    %v132 = vld [vmem:[#allocation6 + $0x104] sm:$0xf]
    %v133 = vld [vmem:[#allocation6 + $0x108] sm:$0xf]
    %v134 = vld [vmem:[#allocation6 + $0x10c] sm:$0xf]
    %v135 = vld [vmem:[#allocation6 + $0x110] sm:$0xf]
    %v136 = vld [vmem:[#allocation6 + $0x114] sm:$0xf]
    %v137 = vld [vmem:[#allocation6 + $0x118] sm:$0xf]
    %v138 = vld [vmem:[#allocation6 + $0x11c] sm:$0xf]
    %v139 = vld [vmem:[#allocation6 + $0x120] sm:$0xf]
    %v140 = vld [vmem:[#allocation6 + $0x124] sm:$0xf]
    %v141 = vld [vmem:[#allocation6 + $0x128] sm:$0xf]
    %v142 = vld [vmem:[#allocation6 + $0x12c] sm:$0xf]
    %v143 = vld [vmem:[#allocation6 + $0x130] sm:$0xf]
    %v144 = vld [vmem:[#allocation6 + $0x134] sm:$0xf]
    %v145 = vld [vmem:[#allocation6 + $0x138] sm:$0xf]
    %v146 = vld [vmem:[#allocation6 + $0x13c] sm:$0xf]
    %v147 = vld [vmem:[#allocation6 + $0x140] sm:$0xf]
    %v148 = vld [vmem:[#allocation6 + $0x144] sm:$0xf]
    %v149 = vld [vmem:[#allocation6 + $0x148] sm:$0xf]
    %v150 = vld [vmem:[#allocation6 + $0x14c] sm:$0xf]
    %v151 = vld [vmem:[#allocation6 + $0x150] sm:$0xf]
    %v152 = vld [vmem:[#allocation6 + $0x154] sm:$0xf]
    %v153 = vld [vmem:[#allocation6 + $0x158] sm:$0xf]
    %v154 = vld [vmem:[#allocation6 + $0x15c] sm:$0xf]
    %v155 = vld [vmem:[#allocation6 + $0x160] sm:$0xf]
    %v156 = vld [vmem:[#allocation6 + $0x164] sm:$0xf]
    %v157 = vld [vmem:[#allocation6 + $0x168] sm:$0xf]
    %v158 = vld [vmem:[#allocation6 + $0x16c] sm:$0xf]
    %v159 = vld [vmem:[#allocation6 + $0x170] sm:$0xf]
    %v160 = vld [vmem:[#allocation6 + $0x174] sm:$0xf]
    %v161 = vld [vmem:[#allocation6 + $0x178] sm:$0xf]
    %v162 = vld [vmem:[#allocation6 + $0x17c] sm:$0xf]
    %v163 = vld [vmem:[%s1] sm:$0xff]
    %v164 = vld [vmem:[%s3] sm:$0xf]
    %vm165 = vcmask 31744
    %v167 = vsel %vm165, %v163, 0
    %vm169 = vcmask 1043456
    %v171 = vsel %vm169, %v164, 0
    %173 = vmatprep.subr.mxu0 0.0
    %174 = vmatpush1.msra.mxu0 0.0
    %175 = vmatprep.subr.mxu0 0.0
    %176 = vmatpush1.msra.mxu0 0.0
    %177 = vmatprep.subr.mxu0 0.0
    %178 = vmatpush1.msra.mxu0 0.0
    %179 = vmatprep.subr.mxu0 0.0
    %180 = vmatpush1.msra.mxu0 0.0
    %181 = vmatprep.subr.mxu0 0.0
    %182 = vmatpush1.msra.mxu0 0.0
    %183 = vmatprep.subr.mxu0 0.0
    %184 = vmatpush1.msra.mxu0 0.0
    %185 = vmatprep.subr.mxu0 0.0
    %186 = vmatpush1.msra.mxu0 0.0
    %187 = vmatprep.subr.mxu0 0.0
    %188 = vmatpush1.msra.mxu0 0.0
    %189 = vmatprep.subr.mxu0 0.0
    %190 = vmatpush1.msra.mxu0 0.0
    %191 = vmatprep.subr.mxu0 0.0
    %192 = vmatpush1.msra.mxu0 0.0
    %193 = vmatprep.subr.mxu0 0.0
    %194 = vmatpush1.msra.mxu0 0.0
    %195 = vmatprep.subr.mxu0 0.0
    %196 = vmatpush1.msra.mxu0 0.0
    %197 = vmatprep.subr.mxu0 0.0
    %198 = vmatpush1.msra.mxu0 0.0
    %199 = vmatprep.subr.mxu0 0.0
    %200 = vmatpush1.msra.mxu0 0.0
    %201 = vmatprep.subr.mxu0 0.0
    %202 = vmatpush1.msra.mxu0 0.0
    %203 = vmatprep.subr.mxu0 0.0
    %204 = vmatpush1.msra.mxu0 %v171
    %205 = vmatprep.subr.mxu0 0.0
    %206 = vmatpush2.msra.mxu0 0.0
    %207 = vmatprep.subr.mxu0 0.0
    %208 = vmatpush2.msra.mxu0 0.0
    %209 = vmatprep.subr.mxu0 0.0
    %210 = vmatpush2.msra.mxu0 0.0
    %211 = vmatprep.subr.mxu0 0.0
    %212 = vmatpush2.msra.mxu0 0.0
    %213 = vmatprep.subr.mxu0 0.0
    %214 = vmatpush2.msra.mxu0 0.0
    %215 = vmatprep.subr.mxu0 0.0
    %216 = vmatpush2.msra.mxu0 0.0
    %217 = vmatprep.subr.mxu0 0.0
    %218 = vmatpush2.msra.mxu0 0.0
    %219 = vmatprep.subr.mxu0 0.0
    %220 = vmatpush2.msra.mxu0 0.0
    %221 = vmatprep.subr.mxu0 0.0
    %222 = vmatpush2.msra.mxu0 0.0
    %223 = vmatprep.subr.mxu0 0.0
    %224 = vmatpush2.msra.mxu0 0.0
    %225 = vmatprep.subr.mxu0 0.0
    %226 = vmatpush2.msra.mxu0 0.0
    %227 = vmatprep.subr.mxu0 0.0
    %228 = vmatpush2.msra.mxu0 0.0
    %229 = vmatprep.subr.mxu0 0.0
    %230 = vmatpush2.msra.mxu0 0.0
    %231 = vmatprep.subr.mxu0 0.0
    %232 = vmatpush2.msra.mxu0 0.0
    %233 = vmatprep.subr.mxu0 0.0
    %234 = vmatpush2.msra.mxu0 0.0
    %235 = vmatprep.subr.mxu0 0.0
    %236 = vmatpush2.msra.mxu0 0.0
    %237 = vmatprep.mubr.f32.mxu0 0.0
    %238 = vmatmul.mubr.f32.gmra.mxu0 %v167
    %v239 = vpop.f32.mrf.mxu0
    %v240 = vadd.f32 0.0, %v239
    %v241 = vpop.f32.mrf.mxu0
    %242 = vdwg.mxu0
    %v339 = vunpack.c.l.b16 %v67
    %v340 = vunpack.c.l.b16 %v68
    %v341 = vunpack.c.l.b16 %v69
    %v342 = vunpack.c.l.b16 %v70
    %v343 = vunpack.c.l.b16 %v71
    %v344 = vunpack.c.l.b16 %v72
    %v345 = vunpack.c.l.b16 %v73
    %v346 = vunpack.c.l.b16 %v74
    %v347 = vunpack.c.l.b16 %v75
    %v348 = vunpack.c.l.b16 %v76
    %v349 = vunpack.c.l.b16 %v77
    %v350 = vunpack.c.l.b16 %v78
    %v351 = vunpack.c.l.b16 %v79
    %v352 = vunpack.c.l.b16 %v80
    %v353 = vunpack.c.l.b16 %v81
    %v354 = vunpack.c.l.b16 %v82
    %v355 = vunpack.c.l.b16 %v83
    %v356 = vunpack.c.l.b16 %v84
    %v357 = vunpack.c.l.b16 %v85
    %v358 = vunpack.c.l.b16 %v86
    %v359 = vunpack.c.l.b16 %v87
    %v360 = vunpack.c.l.b16 %v88
    %v361 = vunpack.c.l.b16 %v89
    %v362 = vunpack.c.l.b16 %v90
    %v363 = vunpack.c.l.b16 %v91
    %v364 = vunpack.c.l.b16 %v92
    %v365 = vunpack.c.l.b16 %v93
    %v366 = vunpack.c.l.b16 %v94
    %v367 = vunpack.c.l.b16 %v95
    %v368 = vunpack.c.l.b16 %v96
    %v369 = vunpack.c.l.b16 %v97
    %v370 = vunpack.c.l.b16 %v98
    %v371 = vunpack.c.l.b16 %v99
    %v372 = vunpack.c.l.b16 %v100
    %v373 = vunpack.c.l.b16 %v101
    %v374 = vunpack.c.l.b16 %v102
    %v375 = vunpack.c.l.b16 %v103
    %v376 = vunpack.c.l.b16 %v104
    %v377 = vunpack.c.l.b16 %v105
    %v378 = vunpack.c.l.b16 %v106
    %v379 = vunpack.c.l.b16 %v107
    %v380 = vunpack.c.l.b16 %v108
    %v381 = vunpack.c.l.b16 %v109
    %v382 = vunpack.c.l.b16 %v110
    %v383 = vunpack.c.l.b16 %v111
    %v384 = vunpack.c.l.b16 %v112
    %v385 = vunpack.c.l.b16 %v113
    %v386 = vunpack.c.l.b16 %v114
    %v387 = vunpack.c.l.b16 %v115
    %v388 = vunpack.c.l.b16 %v116
    %v389 = vunpack.c.l.b16 %v117
    %v390 = vunpack.c.l.b16 %v118
    %v391 = vunpack.c.l.b16 %v119
    %v392 = vunpack.c.l.b16 %v120
    %v393 = vunpack.c.l.b16 %v121
    %v394 = vunpack.c.l.b16 %v122
    %v395 = vunpack.c.l.b16 %v123
    %v396 = vunpack.c.l.b16 %v124
    %v397 = vunpack.c.l.b16 %v125
    %v398 = vunpack.c.l.b16 %v126
    %v399 = vunpack.c.l.b16 %v127
    %v400 = vunpack.c.l.b16 %v128
    %v401 = vunpack.c.l.b16 %v129
    %v402 = vunpack.c.l.b16 %v130
    %v403 = vunpack.c.l.b16 %v131
    %v404 = vunpack.c.l.b16 %v132
    %v405 = vunpack.c.l.b16 %v133
    %v406 = vunpack.c.l.b16 %v134
    %v407 = vunpack.c.l.b16 %v135
    %v408 = vunpack.c.l.b16 %v136
    %v409 = vunpack.c.l.b16 %v137
    %v410 = vunpack.c.l.b16 %v138
    %v411 = vunpack.c.l.b16 %v139
    %v412 = vunpack.c.l.b16 %v140
    %v413 = vunpack.c.l.b16 %v141
    %v414 = vunpack.c.l.b16 %v142
    %v415 = vunpack.c.l.b16 %v143
    %v416 = vunpack.c.l.b16 %v144
    %v417 = vunpack.c.l.b16 %v145
    %v418 = vunpack.c.l.b16 %v146
    %v419 = vunpack.c.l.b16 %v147
    %v420 = vunpack.c.l.b16 %v148
    %v421 = vunpack.c.l.b16 %v149
    %v422 = vunpack.c.l.b16 %v150
    %v423 = vunpack.c.l.b16 %v151
    %v424 = vunpack.c.l.b16 %v152
    %v425 = vunpack.c.l.b16 %v153
    %v426 = vunpack.c.l.b16 %v154
    %v427 = vunpack.c.l.b16 %v155
    %v428 = vunpack.c.l.b16 %v156
    %v429 = vunpack.c.l.b16 %v157
    %v430 = vunpack.c.l.b16 %v158
    %v431 = vunpack.c.l.b16 %v159
    %v432 = vunpack.c.l.b16 %v160
    %v433 = vunpack.c.l.b16 %v161
    %v434 = vunpack.c.l.b16 %v162
    %v435 = vpack.c.b16 %v340, %v339
    %v436 = vpack.c.b16 %v342, %v341
    %v437 = vpack.c.b16 %v344, %v343
    %v438 = vpack.c.b16 %v346, %v345
    %v439 = vpack.c.b16 %v348, %v347
    %v440 = vpack.c.b16 %v350, %v349
    %v441 = vpack.c.b16 %v352, %v351
    %v442 = vpack.c.b16 %v354, %v353
    %v443 = vpack.c.b16 %v356, %v355
    %v444 = vpack.c.b16 %v358, %v357
    %v445 = vpack.c.b16 %v360, %v359
    %v446 = vpack.c.b16 %v362, %v361
    %v447 = vpack.c.b16 %v364, %v363
    %v448 = vpack.c.b16 %v366, %v365
    %v449 = vpack.c.b16 %v368, %v367
    %v450 = vpack.c.b16 %v370, %v369
    %v451 = vpack.c.b16 %v372, %v371
    %v452 = vpack.c.b16 %v374, %v373
    %v453 = vpack.c.b16 %v376, %v375
    %v454 = vpack.c.b16 %v378, %v377
    %v455 = vpack.c.b16 %v380, %v379
    %v456 = vpack.c.b16 %v382, %v381
    %v457 = vpack.c.b16 %v384, %v383
    %v458 = vpack.c.b16 %v386, %v385
    %v459 = vpack.c.b16 %v388, %v387
    %v460 = vpack.c.b16 %v390, %v389
    %v461 = vpack.c.b16 %v392, %v391
    %v462 = vpack.c.b16 %v394, %v393
    %v463 = vpack.c.b16 %v396, %v395
    %v464 = vpack.c.b16 %v398, %v397
    %v465 = vpack.c.b16 %v400, %v399
    %v466 = vpack.c.b16 %v402, %v401
    %v467 = vpack.c.b16 %v404, %v403
    %v468 = vpack.c.b16 %v406, %v405
    %v469 = vpack.c.b16 %v408, %v407
    %v470 = vpack.c.b16 %v410, %v409
    %v471 = vpack.c.b16 %v412, %v411
    %v472 = vpack.c.b16 %v414, %v413
    %v473 = vpack.c.b16 %v416, %v415
    %v474 = vpack.c.b16 %v418, %v417
    %v475 = vpack.c.b16 %v420, %v419
    %v476 = vpack.c.b16 %v422, %v421
    %v477 = vpack.c.b16 %v424, %v423
    %v478 = vpack.c.b16 %v426, %v425
    %v479 = vpack.c.b16 %v428, %v427
    %v480 = vpack.c.b16 %v430, %v429
    %v481 = vpack.c.b16 %v432, %v431
    %v482 = vpack.c.b16 %v434, %v433
    %531 = vmatprep.subr.bf16.mxu0 0
    %532 = vmatpush1.bf16.msra.mxu0 %v442
    %533 = vmatprep.subr.bf16.mxu0 0
    %534 = vmatpush1.bf16.msra.mxu0 %v441
    %535 = vmatprep.subr.bf16.mxu0 0
    %536 = vmatpush1.bf16.msra.mxu0 %v440
    %537 = vmatprep.subr.bf16.mxu0 0
    %538 = vmatpush1.bf16.msra.mxu0 %v439
    %539 = vmatprep.subr.bf16.mxu0 0
    %540 = vmatpush1.bf16.msra.mxu0 %v438
    %541 = vmatprep.subr.bf16.mxu0 0
    %542 = vmatpush1.bf16.msra.mxu0 %v437
    %543 = vmatprep.subr.bf16.mxu0 0
    %544 = vmatpush1.bf16.msra.mxu0 %v436
    %545 = vmatprep.subr.bf16.mxu0 0
    %546 = vmatpush1.bf16.msra.mxu0 %v435
    %547 = vmatprep.subr.bf16.mxu0 0
    %548 = vmatpush2.bf16.msra.mxu0 %v450
    %549 = vmatprep.subr.bf16.mxu0 0
    %550 = vmatpush2.bf16.msra.mxu0 %v449
    %551 = vmatprep.subr.bf16.mxu0 0
    %552 = vmatpush2.bf16.msra.mxu0 %v448
    %553 = vmatprep.subr.bf16.mxu0 0
    %554 = vmatpush2.bf16.msra.mxu0 %v447
    %555 = vmatprep.subr.bf16.mxu0 0
    %556 = vmatpush2.bf16.msra.mxu0 %v446
    %557 = vmatprep.subr.bf16.mxu0 0
    %558 = vmatpush2.bf16.msra.mxu0 %v445
    %559 = vmatprep.subr.bf16.mxu0 0
    %560 = vmatpush2.bf16.msra.mxu0 %v444
    %561 = vmatprep.subr.bf16.mxu0 0
    %562 = vmatpush2.bf16.msra.mxu0 %v443
    %563 = vmatprep.mubr.bf16.mxu0 %v62
    %564 = vmatmul.mubr.bf16.gmra.mxu0 %v61
    %v565 = vpop.f32.mrf.mxu0
    %v566 = vadd.f32 %v240, %v565
    %v567 = vpop.f32.mrf.mxu0
    %v568 = vpop.f32.mrf.mxu0
    %v569 = vpop.f32.mrf.mxu0
    %570 = vdwg.mxu0
    %571 = vmatprep.subr.bf16.mxu0 0
    %572 = vmatpush1.bf16.msra.mxu0 %v458
    %573 = vmatprep.subr.bf16.mxu0 0
    %574 = vmatpush1.bf16.msra.mxu0 %v457
    %575 = vmatprep.subr.bf16.mxu0 0
    %576 = vmatpush1.bf16.msra.mxu0 %v456
    %577 = vmatprep.subr.bf16.mxu0 0
    %578 = vmatpush1.bf16.msra.mxu0 %v455
    %579 = vmatprep.subr.bf16.mxu0 0
    %580 = vmatpush1.bf16.msra.mxu0 %v454
    %581 = vmatprep.subr.bf16.mxu0 0
    %582 = vmatpush1.bf16.msra.mxu0 %v453
    %583 = vmatprep.subr.bf16.mxu0 0
    %584 = vmatpush1.bf16.msra.mxu0 %v452
    %585 = vmatprep.subr.bf16.mxu0 0
    %586 = vmatpush1.bf16.msra.mxu0 %v451
    %587 = vmatprep.subr.bf16.mxu0 0
    %588 = vmatpush2.bf16.msra.mxu0 %v466
    %589 = vmatprep.subr.bf16.mxu0 0
    %590 = vmatpush2.bf16.msra.mxu0 %v465
    %591 = vmatprep.subr.bf16.mxu0 0
    %592 = vmatpush2.bf16.msra.mxu0 %v464
    %593 = vmatprep.subr.bf16.mxu0 0
    %594 = vmatpush2.bf16.msra.mxu0 %v463
    %595 = vmatprep.subr.bf16.mxu0 0
    %596 = vmatpush2.bf16.msra.mxu0 %v462
    %597 = vmatprep.subr.bf16.mxu0 0
    %598 = vmatpush2.bf16.msra.mxu0 %v461
    %599 = vmatprep.subr.bf16.mxu0 0
    %600 = vmatpush2.bf16.msra.mxu0 %v460
    %601 = vmatprep.subr.bf16.mxu0 0
    %602 = vmatpush2.bf16.msra.mxu0 %v459
    %603 = vmatprep.mubr.bf16.mxu0 %v64
    %604 = vmatmul.mubr.bf16.gmra.mxu0 %v63
    %v605 = vpop.f32.mrf.mxu0
    %v606 = vadd.f32 %v566, %v605
    %v607 = vpop.f32.mrf.mxu0
    %v608 = vpop.f32.mrf.mxu0
    %v609 = vpop.f32.mrf.mxu0
    %610 = vdwg.mxu0
    %611 = vmatprep.subr.bf16.mxu0 0
    %612 = vmatpush1.bf16.msra.mxu0 %v474
    %613 = vmatprep.subr.bf16.mxu0 0
    %614 = vmatpush1.bf16.msra.mxu0 %v473
    %615 = vmatprep.subr.bf16.mxu0 0
    %616 = vmatpush1.bf16.msra.mxu0 %v472
    %617 = vmatprep.subr.bf16.mxu0 0
    %618 = vmatpush1.bf16.msra.mxu0 %v471
    %619 = vmatprep.subr.bf16.mxu0 0
    %620 = vmatpush1.bf16.msra.mxu0 %v470
    %621 = vmatprep.subr.bf16.mxu0 0
    %622 = vmatpush1.bf16.msra.mxu0 %v469
    %623 = vmatprep.subr.bf16.mxu0 0
    %624 = vmatpush1.bf16.msra.mxu0 %v468
    %625 = vmatprep.subr.bf16.mxu0 0
    %626 = vmatpush1.bf16.msra.mxu0 %v467
    %627 = vmatprep.subr.bf16.mxu0 0
    %628 = vmatpush2.bf16.msra.mxu0 %v482
    %629 = vmatprep.subr.bf16.mxu0 0
    %630 = vmatpush2.bf16.msra.mxu0 %v481
    %631 = vmatprep.subr.bf16.mxu0 0
    %632 = vmatpush2.bf16.msra.mxu0 %v480
    %633 = vmatprep.subr.bf16.mxu0 0
    %634 = vmatpush2.bf16.msra.mxu0 %v479
    %635 = vmatprep.subr.bf16.mxu0 0
    %636 = vmatpush2.bf16.msra.mxu0 %v478
    %637 = vmatprep.subr.bf16.mxu0 0
    %638 = vmatpush2.bf16.msra.mxu0 %v477
    %639 = vmatprep.subr.bf16.mxu0 0
    %640 = vmatpush2.bf16.msra.mxu0 %v476
    %641 = vmatprep.subr.bf16.mxu0 0
    %642 = vmatpush2.bf16.msra.mxu0 %v475
    %643 = vmatprep.mubr.bf16.mxu0 %v66
    %644 = vmatmul.mubr.bf16.gmra.mxu0 %v65
    %v645 = vpop.f32.mrf.mxu0
    %v646 = vadd.f32 %v606, %v645
    %v647 = vpop.f32.mrf.mxu0
    %v648 = vpop.f32.mrf.mxu0
    %v649 = vpop.f32.mrf.mxu0
    %650 = vdwg.mxu0
    %v651 = vld [vmem:[%s4] sm:$0x1]
    %v653 = vlaneseq
    %v654 = vshrl.u32 %v653, 7
    %v655 = vsub.s32 0, %v654
    %v656 = vrot.slane %v651, %v655
    %v658 = vadd.f32 %v646, %v656
    %v659 = vmax.f32 %v658, 0.0
    %v660 = vld [vmem:[%s5] sm:$0x1]
    %s661 = sld [smem:[#allocation2]]
    %v662 = vstv %s661
    %663 = vmatprep.subr.mxu0 0.0
    %664 = vmatpush1.xpose.msra.mxu0 0.0
    %665 = vmatprep.subr.mxu0 0.0
    %666 = vmatpush1.xpose.msra.mxu0 0.0
    %667 = vmatprep.subr.mxu0 0.0
    %668 = vmatpush1.xpose.msra.mxu0 0.0
    %669 = vmatprep.subr.mxu0 0.0
    %670 = vmatpush1.xpose.msra.mxu0 0.0
    %671 = vmatprep.subr.mxu0 0.0
    %672 = vmatpush1.xpose.msra.mxu0 0.0
    %673 = vmatprep.subr.mxu0 0.0
    %674 = vmatpush1.xpose.msra.mxu0 0.0
    %675 = vmatprep.subr.mxu0 0.0
    %676 = vmatpush1.xpose.msra.mxu0 0.0
    %677 = vmatprep.subr.mxu0 0.0
    %678 = vmatpush1.xpose.msra.mxu0 0.0
    %679 = vmatprep.subr.mxu0 0.0
    %680 = vmatpush1.xpose.msra.mxu0 0.0
    %681 = vmatprep.subr.mxu0 0.0
    %682 = vmatpush1.xpose.msra.mxu0 0.0
    %683 = vmatprep.subr.mxu0 0.0
    %684 = vmatpush1.xpose.msra.mxu0 0.0
    %685 = vmatprep.subr.mxu0 0.0
    %686 = vmatpush1.xpose.msra.mxu0 0.0
    %687 = vmatprep.subr.mxu0 0.0
    %688 = vmatpush1.xpose.msra.mxu0 0.0
    %689 = vmatprep.subr.mxu0 0.0
    %690 = vmatpush1.xpose.msra.mxu0 0.0
    %691 = vmatprep.subr.mxu0 0.0
    %692 = vmatpush1.xpose.msra.mxu0 0.0
    %693 = vmatprep.subr.mxu0 0.0
    %694 = vmatpush1.xpose.msra.mxu0 %v659
    %695 = vmatprep.subr.mxu0 0.0
    %696 = vmatpush2.xpose.msra.mxu0 0.0
    %697 = vmatprep.subr.mxu0 0.0
    %698 = vmatpush2.xpose.msra.mxu0 0.0
    %699 = vmatprep.subr.mxu0 0.0
    %700 = vmatpush2.xpose.msra.mxu0 0.0
    %701 = vmatprep.subr.mxu0 0.0
    %702 = vmatpush2.xpose.msra.mxu0 0.0
    %703 = vmatprep.subr.mxu0 0.0
    %704 = vmatpush2.xpose.msra.mxu0 0.0
    %705 = vmatprep.subr.mxu0 0.0
    %706 = vmatpush2.xpose.msra.mxu0 0.0
    %707 = vmatprep.subr.mxu0 0.0
    %708 = vmatpush2.xpose.msra.mxu0 0.0
    %709 = vmatprep.subr.mxu0 0.0
    %710 = vmatpush2.xpose.msra.mxu0 0.0
    %711 = vmatprep.subr.mxu0 0.0
    %712 = vmatpush2.xpose.msra.mxu0 0.0
    %713 = vmatprep.subr.mxu0 0.0
    %714 = vmatpush2.xpose.msra.mxu0 0.0
    %715 = vmatprep.subr.mxu0 0.0
    %716 = vmatpush2.xpose.msra.mxu0 0.0
    %717 = vmatprep.subr.mxu0 0.0
    %718 = vmatpush2.xpose.msra.mxu0 0.0
    %719 = vmatprep.subr.mxu0 0.0
    %720 = vmatpush2.xpose.msra.mxu0 0.0
    %721 = vmatprep.subr.mxu0 0.0
    %722 = vmatpush2.xpose.msra.mxu0 0.0
    %723 = vmatprep.subr.mxu0 0.0
    %724 = vmatpush2.xpose.msra.mxu0 0.0
    %725 = vmatprep.subr.mxu0 0.0
    %726 = vmatpush2.xpose.msra.mxu0 0.0
    %727 = vmatprep.mubr.f32.mxu0 0.0
    %728 = vmatmul.mubr.f32.gmra.mxu0 %v660
    %v729 = vpop.f32.mrf.mxu0
    %v730 = vadd.f32 %v662, %v729
    %v731 = vpop.f32.mrf.mxu0
    %732 = vdwg.mxu0
    %v733 = vmax.f32 %v730, 0.0
    %vm734 = vcmask 57344
    %735 = vst.msk [vmem:[#allocation8] sm:$0x1] %vm734, %v733
    // Predicated region
    $region38: #{tpu_custom_call.1} parent=1 // pred_check
      _
    $region39: #{tpu_custom_call.1} parent=1 // pred_check_branch
      %737 = sbr.rel (0) target = $region41
    $region40: #{tpu_custom_call.1} parent=1 // pred_region
      %s739 = ssub.s32 16, 16
      %740 = vsyncadd [#allocation5], %s739
      %s742 = sshll.u32 [#allocation8], 4
      %s743 = int_to_ptr.vmem [resolvable:$true] %s742
      %745 = dma.vmem_to_hbm [thread:$0]  %s743, 16, %s7, [#allocation5]
    $region41: #{tpu_custom_call.1} parent=1 // pred_fallthru
      _
    // Predicated region
    $region42: #{tpu_custom_call.1} parent=1 // pred_check
      _
    $region43: #{tpu_custom_call.1} parent=1 // pred_check_branch
      %747 = sbr.rel (0) target = $region45
    $region44: #{tpu_custom_call.1} parent=1 // pred_region
      %748 = dma.done [#allocation5], 16
    $region45: #{tpu_custom_call.1} parent=1 // pred_fallthru
      _
    %749 = vsyncpa [#allocation4], 1
    %750 = vsyncpa [#allocation7], 1
    %751 = vsyncpa [#allocation5], 1

</llo_original>
